<compile_context>
chip_gen: v5e
topology: v5e:2x2
jax: 0.10.0
libtpu: 0.0.40
codegen_flags: <defaults>
</compile_context>

<pallas_src>
import jax
import jax.numpy as jnp
from jax.experimental import pallas as pl
from jax.experimental.pallas import tpu as pltpu


PACK = 64  # samples packed per lane-dense row (64*4 = 256 input lanes, 64*2 = 128 output lanes)


def _round_up(n, m):
    return ((n + m - 1) // m) * m


def mlp_kernel(x_ref, w1_ref, b1_ref, w2_ref, b2_ref, w3_ref, b3_ref, o_ref):
    """One batch tile.

    x_ref: [tr, PACK*4]  (each row = 64 packed samples, lane-dense)
    o_ref: [tr, PACK*2]  (packed outputs, lane-dense 128-wide stores)
    Weights are block-diagonal replicated W^T, so each matmul applies the
    per-sample Linear independently to every packed sample.
    """
    x = x_ref[...]
    h1 = jnp.dot(x, w1_ref[...], preferred_element_type=jnp.float32) + b1_ref[...]
    h1 = jnp.maximum(h1, 0.0)
    h2 = jnp.dot(h1, w2_ref[...], preferred_element_type=jnp.float32) + b2_ref[...]
    h2 = jnp.maximum(h2, 0.0)
    o_ref[...] = (
        jnp.dot(h2, w3_ref[...], preferred_element_type=jnp.float32) + b3_ref[...]
    )


def prepare_params(params, pack=PACK):
    """One-time parameter glue (hoisted out of the forward path).

    Builds block-diagonal replicated transposed weights so that the packed
    [B/pack, pack*4] input layout can be consumed directly:
      W1_big: (pack*4, pack*8), W2_big: (pack*8, pack*8), W3_big: (pack*8, pack*2)
    Biases are tiled to (1, pack*out) rows that broadcast over the batch tile.
    """
    eye = jnp.eye(pack, dtype=jnp.float32)
    w1 = jnp.kron(eye, params["w1"].T)                 # (256, 512)
    w2 = jnp.kron(eye, params["w2"].T)                 # (512, 512)
    w3 = jnp.kron(eye, params["w3"].T)                 # (512, 128)
    b1 = jnp.tile(params["b1"], pack)[None, :]         # (1, 512)
    b2 = jnp.tile(params["b2"], pack)[None, :]         # (1, 512)
    b3 = jnp.tile(params["b3"], pack)[None, :]         # (1, 128)
    return (w1, b1, w2, b2, w3, b3)


def _choose_rows_per_step(num_rows, cap_rows):
    """Rows (of PACK packed samples) per grid step.

    Must be a multiple of 8 or equal to num_rows (the (8,128) block rule).
    Prefer >= 2 grid steps so v7x's two TensorCores split the batch.
    """
    cap_rows = max(8, _round_up(cap_rows, 8))  # robust to odd caller overrides
    if num_rows <= 8:
        return num_rows                        # single tiny block == full dim
    tr = min(cap_rows, _round_up(num_rows, 8))
    if tr >= num_rows:                         # would collapse to 1 grid step
        tr = _round_up(pl.cdiv(num_rows, 2), 8)
    return tr


def net_forward(x, prepped, *, block_rows=2048):
    """x: [B, 4] float32 (PyTorch layout). Returns [B, 2] float32.

    block_rows = packed rows per grid step (2048 rows = 131072 samples/step).
    """
    w1, b1, w2, b2, w3, b3 = prepped
    B, in_dim = x.shape
    pack = w1.shape[0] // in_dim
    out_dim = w3.shape[1] // pack

    # Pad the batch only up to the pack size (<= 63 rows), never to a full tile.
    b_pad = _round_up(B, pack)
    if b_pad != B:
        x = jnp.pad(x, ((0, b_pad - B), (0, 0)))
    num_rows = b_pad // pack
    # Contiguous (free) reshape: 64 samples packed per lane-dense row.
    xr = x.reshape(num_rows, pack * in_dim)

    tr = _choose_rows_per_step(num_rows, block_rows)
    grid = (pl.cdiv(num_rows, tr),)  # ragged last block is masked by Pallas

    out = pl.pallas_call(
        mlp_kernel,
        out_shape=jax.ShapeDtypeStruct((num_rows, pack * out_dim), jnp.float32),
        grid=grid,
        in_specs=[
            # Streamed batch tiles (double-buffered by the Pallas pipeline).
            pl.BlockSpec((tr, pack * in_dim), lambda i: (i, 0)),
            # Weights/biases: constant index_map -> VMEM-resident across steps.
            pl.BlockSpec(w1.shape, lambda i: (0, 0)),
            pl.BlockSpec(b1.shape, lambda i: (0, 0)),
            pl.BlockSpec(w2.shape, lambda i: (0, 0)),
            pl.BlockSpec(b2.shape, lambda i: (0, 0)),
            pl.BlockSpec(w3.shape, lambda i: (0, 0)),
            pl.BlockSpec(b3.shape, lambda i: (0, 0)),
        ],
        out_specs=pl.BlockSpec((tr, pack * out_dim), lambda i: (i, 0)),
        compiler_params=pltpu.CompilerParams(
            dimension_semantics=("parallel",),   # megacore split on v7x
            vmem_limit_bytes=40 << 20,           # fits big tiles on v5e/v6e/v7x
        ),
    )(xr, w1, b1, w2, b2, w3, b3)

    # Free reshape back to per-sample layout; drop the pack padding.
    return out.reshape(b_pad, out_dim)[:B]


def init_params(key):
    """Deterministic synthetic init matching the nn.Linear shapes in Net.__init__."""
    ks = jax.random.split(key, 6)
    # PyTorch nn.Linear stores weight as (out_features, in_features).
    return {
        "w1": jax.random.uniform(ks[0], (8, 4), jnp.float32, -0.5, 0.5),
        "b1": jax.random.uniform(ks[1], (8,), jnp.float32, -0.5, 0.5),
        "w2": jax.random.uniform(ks[2], (8, 8), jnp.float32, -0.35, 0.35),
        "b2": jax.random.uniform(ks[3], (8,), jnp.float32, -0.35, 0.35),
        "w3": jax.random.uniform(ks[4], (2, 8), jnp.float32, -0.35, 0.35),
        "b3": jax.random.uniform(ks[5], (2,), jnp.float32, -0.35, 0.35),
    }


def net_forward_ref(x, p):
    """Pure-JAX reference mirroring the PyTorch forward."""
    h = jnp.maximum(x @ p["w1"].T + p["b1"], 0.0)
    h = jnp.maximum(h @ p["w2"].T + p["b2"], 0.0)
    return h @ p["w3"].T + p["b3"]


if __name__ == "__main__":
    key = jax.random.PRNGKey(0)
    pkey, xkey = jax.random.split(key)
    params = init_params(pkey)
    prepped = prepare_params(params)  # one-time glue, not per-forward

    # Small test matching the module's expected input: [batch, 4].
    batch = 8
    x = jax.random.normal(xkey, (batch, 4), jnp.float32)
    out = jax.block_until_ready(net_forward(x, prepped))
    ref = net_forward_ref(x, params)
    assert out.shape == (batch, 2), out.shape
    assert jnp.allclose(out, ref, atol=1e-5, rtol=1e-5), "mismatch vs reference"

    # Batch not a multiple of the 64-sample pack (exercises pack-pad + slice).
    x2 = jax.random.normal(jax.random.PRNGKey(1), (300, 4), jnp.float32)
    out2 = jax.block_until_ready(net_forward(x2, prepped))
    ref2 = net_forward_ref(x2, params)
    assert out2.shape == (300, 2), out2.shape
    assert jnp.allclose(out2, ref2, atol=1e-5, rtol=1e-5), "mismatch (unaligned batch)"

    # Multi-step grid with a ragged last block (small block_rows override).
    x3 = jax.random.normal(jax.random.PRNGKey(2), (1280, 4), jnp.float32)
    out3 = jax.block_until_ready(net_forward(x3, prepped, block_rows=8))
    ref3 = net_forward_ref(x3, params)
    assert out3.shape == (1280, 2), out3.shape
    assert jnp.allclose(out3, ref3, atol=1e-5, rtol=1e-5), "mismatch (gridded/ragged)"

    print("KERNEL_OK")
</pallas_src>

<mosaic_0001>
module attributes {stable_mosaic.version = 11 : i64} {
  func.func @mlp_kernel(%arg0: i32, %arg1: memref<1x256xf32, #tpu.memory_space<vmem>>, %arg2: memref<256x512xf32, #tpu.memory_space<vmem>>, %arg3: memref<1x512xf32, #tpu.memory_space<vmem>>, %arg4: memref<512x512xf32, #tpu.memory_space<vmem>>, %arg5: memref<1x512xf32, #tpu.memory_space<vmem>>, %arg6: memref<512x128xf32, #tpu.memory_space<vmem>>, %arg7: memref<1x128xf32, #tpu.memory_space<vmem>>, %arg8: memref<1x128xf32, #tpu.memory_space<vmem>>) attributes {dimension_semantics = [#tpu.dimension_semantics<parallel>], iteration_bounds = array<i64: 1>, scalar_prefetch = 0 : i64, scratch_operands = 0 : i64, tpu.core_type = #tpu.core_type<tc>, window_params = [{transform_indices = @transform_0, window_bounds = array<i64: 1, 256>}, {pipeline_mode = #tpu.pipeline_mode<synchronous>, transform_indices = @transform_1, window_bounds = array<i64: 256, 512>}, {pipeline_mode = #tpu.pipeline_mode<synchronous>, transform_indices = @transform_2, window_bounds = array<i64: 1, 512>}, {pipeline_mode = #tpu.pipeline_mode<synchronous>, transform_indices = @transform_3, window_bounds = array<i64: 512, 512>}, {pipeline_mode = #tpu.pipeline_mode<synchronous>, transform_indices = @transform_4, window_bounds = array<i64: 1, 512>}, {pipeline_mode = #tpu.pipeline_mode<synchronous>, transform_indices = @transform_5, window_bounds = array<i64: 512, 128>}, {pipeline_mode = #tpu.pipeline_mode<synchronous>, transform_indices = @transform_6, window_bounds = array<i64: 1, 128>}, {transform_indices = @transform_7, window_bounds = array<i64: 1, 128>}]} {
    %c0 = arith.constant 0 : index
    %c0_0 = arith.constant 0 : index
    %0 = vector.load %arg1[%c0, %c0_0] : memref<1x256xf32, #tpu.memory_space<vmem>>, vector<1x256xf32>
    %c0_1 = arith.constant 0 : index
    %c0_2 = arith.constant 0 : index
    %1 = vector.load %arg2[%c0_1, %c0_2] : memref<256x512xf32, #tpu.memory_space<vmem>>, vector<256x512xf32>
    %cst = arith.constant dense<0.000000e+00> : vector<1x512xf32>
    %2 = tpu.matmul %0, %1, %cst {dimension_numbers = #tpu.dot_dimension_numbers<[1], [0], [0], [1], [0, 0, 1, 1], [], []>} : vector<1x256xf32>, vector<256x512xf32>, vector<1x512xf32> -> vector<1x512xf32>
    %c0_3 = arith.constant 0 : index
    %c0_4 = arith.constant 0 : index
    %3 = vector.load %arg3[%c0_3, %c0_4] : memref<1x512xf32, #tpu.memory_space<vmem>>, vector<1x512xf32>
    %4 = arith.addf %2, %3 : vector<1x512xf32>
    %cst_5 = arith.constant 0.000000e+00 : f32
    %5 = vector.broadcast %cst_5 : f32 to vector<1x512xf32>
    %6 = arith.maximumf %4, %5 : vector<1x512xf32>
    %c0_6 = arith.constant 0 : index
    %c0_7 = arith.constant 0 : index
    %7 = vector.load %arg4[%c0_6, %c0_7] : memref<512x512xf32, #tpu.memory_space<vmem>>, vector<512x512xf32>
    %cst_8 = arith.constant dense<0.000000e+00> : vector<1x512xf32>
    %8 = tpu.matmul %6, %7, %cst_8 {dimension_numbers = #tpu.dot_dimension_numbers<[1], [0], [0], [1], [0, 0, 1, 1], [], []>} : vector<1x512xf32>, vector<512x512xf32>, vector<1x512xf32> -> vector<1x512xf32>
    %c0_9 = arith.constant 0 : index
    %c0_10 = arith.constant 0 : index
    %9 = vector.load %arg5[%c0_9, %c0_10] : memref<1x512xf32, #tpu.memory_space<vmem>>, vector<1x512xf32>
    %10 = arith.addf %8, %9 : vector<1x512xf32>
    %cst_11 = arith.constant 0.000000e+00 : f32
    %11 = vector.broadcast %cst_11 : f32 to vector<1x512xf32>
    %12 = arith.maximumf %10, %11 : vector<1x512xf32>
    %c0_12 = arith.constant 0 : index
    %c0_13 = arith.constant 0 : index
    %13 = vector.load %arg6[%c0_12, %c0_13] : memref<512x128xf32, #tpu.memory_space<vmem>>, vector<512x128xf32>
    %cst_14 = arith.constant dense<0.000000e+00> : vector<1x128xf32>
    %14 = tpu.matmul %12, %13, %cst_14 {dimension_numbers = #tpu.dot_dimension_numbers<[1], [0], [0], [1], [0, 0, 1, 1], [], []>} : vector<1x512xf32>, vector<512x128xf32>, vector<1x128xf32> -> vector<1x128xf32>
    %c0_15 = arith.constant 0 : index
    %c0_16 = arith.constant 0 : index
    %15 = vector.load %arg7[%c0_15, %c0_16] : memref<1x128xf32, #tpu.memory_space<vmem>>, vector<1x128xf32>
    %16 = arith.addf %14, %15 : vector<1x128xf32>
    %c0_17 = arith.constant 0 : index
    %c0_18 = arith.constant 0 : index
    %17 = vector.load %arg8[%c0_17, %c0_18] : memref<1x128xf32, #tpu.memory_space<vmem>>, vector<1x128xf32>
    tpu.vector_store %arg8[%c0_17, %c0_18], %16 {strides = array<i32>} : memref<1x128xf32, #tpu.memory_space<vmem>>, vector<1x128xf32>,
    return
  }
  func.func @transform_0(%arg0: i32) -> (i32, i32) {
    %c0_i32 = arith.constant 0 : i32
    %c0_i32_0 = arith.constant 0 : i32
    return %arg0, %c0_i32 : i32, i32
  }
  func.func @transform_1(%arg0: i32) -> (i32, i32) {
    %c0_i32 = arith.constant 0 : i32
    %c0_i32_0 = arith.constant 0 : i32
    %c0_i32_1 = arith.constant 0 : i32
    return %c0_i32, %c0_i32_0 : i32, i32
  }
  func.func @transform_2(%arg0: i32) -> (i32, i32) {
    %c0_i32 = arith.constant 0 : i32
    %c0_i32_0 = arith.constant 0 : i32
    %c0_i32_1 = arith.constant 0 : i32
    return %c0_i32, %c0_i32_0 : i32, i32
  }
  func.func @transform_3(%arg0: i32) -> (i32, i32) {
    %c0_i32 = arith.constant 0 : i32
    %c0_i32_0 = arith.constant 0 : i32
    %c0_i32_1 = arith.constant 0 : i32
    return %c0_i32, %c0_i32_0 : i32, i32
  }
  func.func @transform_4(%arg0: i32) -> (i32, i32) {
    %c0_i32 = arith.constant 0 : i32
    %c0_i32_0 = arith.constant 0 : i32
    %c0_i32_1 = arith.constant 0 : i32
    return %c0_i32, %c0_i32_0 : i32, i32
  }
  func.func @transform_5(%arg0: i32) -> (i32, i32) {
    %c0_i32 = arith.constant 0 : i32
    %c0_i32_0 = arith.constant 0 : i32
    %c0_i32_1 = arith.constant 0 : i32
    return %c0_i32, %c0_i32_0 : i32, i32
  }
  func.func @transform_6(%arg0: i32) -> (i32, i32) {
    %c0_i32 = arith.constant 0 : i32
    %c0_i32_0 = arith.constant 0 : i32
    %c0_i32_1 = arith.constant 0 : i32
    return %c0_i32, %c0_i32_0 : i32, i32
  }
  func.func @transform_7(%arg0: i32) -> (i32, i32) {
    %c0_i32 = arith.constant 0 : i32
    %c0_i32_0 = arith.constant 0 : i32
    return %arg0, %c0_i32 : i32, i32
  }
}

</mosaic_0001>

<llo_original>
// kernel: tpu_custom_call.1
$region0: #{tpu_custom_call.1}
  #allocation0 [shape = 'u32[]', space=smem, size = 0x4, offset = 0x4, fixed_abs, tag = 'smem constant byte address 0x4 - core index']
  #allocation1 [shape = 'u32[72,128]{1,0:T(1,128)}', space=vmem, size = 0x9000, scoped, tag = 'internal scratch']
  %s0 = inlined_call_operand.hbm [shape: f32[1,256], index: 0, kind: input, shape index: {}]
  %s1 = inlined_call_operand.hbm [shape: f32[256,512], index: 1, kind: input, shape index: {}]
  %s2 = inlined_call_operand.hbm [shape: f32[1,512], index: 2, kind: input, shape index: {}]
  %s3 = inlined_call_operand.hbm [shape: f32[512,512], index: 3, kind: input, shape index: {}]
  %s4 = inlined_call_operand.hbm [shape: f32[1,512], index: 4, kind: input, shape index: {}]
  %s5 = inlined_call_operand.hbm [shape: f32[512,128], index: 5, kind: input, shape index: {}]
  %s6 = inlined_call_operand.vmem [shape: f32[1,128], index: 6, kind: input, shape index: {}]
  %s7 = inlined_call_operand.hbm [shape: f32[1,128], index: 7, kind: output, shape index: {}]
  %s8 = sld [smem:[#allocation0]]
  $region62: #{tpu_custom_call.1} parent=0
    _
  %s10 = ssub.s32 1, %s8
  %s11 = scalar_select 0, %s10, %s8
  $region1: #{tpu_custom_call.1} parent=0
    #allocation2 [shape = 'u8[1024]{0}', space=vmem, size = 0x400, scoped, tag = 'input window, operand 0, single buffered']
    #allocation3 [shape = 's32[1]{0}', space=sflag, size = 0x4, scoped, tag = 'scoped memory for tpu_custom_call.1']
    #allocation4 [shape = 's32[1]{0}', space=sflag, size = 0x4, scoped, tag = 'scoped memory for tpu_custom_call.1']
    #allocation5 [shape = 'u8[524288]{0}', space=vmem, size = 0x80000, scoped, tag = 'input window, operand 1, single buffered']
    #allocation6 [shape = 's32[1]{0}', space=sflag, size = 0x4, scoped, tag = 'scoped memory for tpu_custom_call.1']
    #allocation7 [shape = 'u8[2048]{0}', space=vmem, size = 0x800, scoped, tag = 'input window, operand 2, single buffered']
    #allocation8 [shape = 'u8[1048576]{0}', space=vmem, size = 0x100000, scoped, tag = 'input window, operand 3, single buffered']
    #allocation9 [shape = 's32[1]{0}', space=sflag, size = 0x4, scoped, tag = 'scoped memory for tpu_custom_call.1']
    #allocation10 [shape = 'u8[2048]{0}', space=vmem, size = 0x800, scoped, tag = 'input window, operand 4, single buffered']
    #allocation11 [shape = 'u8[262144]{0}', space=vmem, size = 0x40000, scoped, tag = 'input window, operand 5, single buffered']
    #allocation12 [shape = 's32[1]{0}', space=sflag, size = 0x4, scoped, tag = 'scoped memory for tpu_custom_call.1']
    #allocation13 [shape = 'u8[512]{0}', space=vmem, size = 0x400, scoped, tag = 'output window, operand 0, single buffered']
    %12 = vsyncpa [#allocation3], 0
    %13 = vsyncpa [#allocation6], 0
    %14 = vsyncpa [#allocation9], 0
    %15 = vsyncpa [#allocation12], 0
    %16 = vsyncpa [#allocation4], 0
    // Predicated region
    $region2: #{tpu_custom_call.1} parent=1 // pred_check
      _
    $region3: #{tpu_custom_call.1} parent=1 // pred_check_branch
      %18 = sbr.rel (0) target = $region5
    $region4: #{tpu_custom_call.1} parent=1 // pred_region
      %20 = vsyncadd [#allocation3], 0
      %s22 = sshll.u32 %s0, 4
      %s23 = int_to_ptr.hbm [resolvable:$true] %s22
      %s24 = sshll.u32 [#allocation2], 4
      %s25 = int_to_ptr.vmem [resolvable:$true] %s24
      %27 = dma.hbm_to_vmem [thread:$0]  %s23, 32, %s25, [#allocation3]
    $region5: #{tpu_custom_call.1} parent=1 // pred_fallthru
      _
    // Predicated region
    $region6: #{tpu_custom_call.1} parent=1 // pred_check
      _
    $region7: #{tpu_custom_call.1} parent=1 // pred_check_branch
      %29 = sbr.rel (0) target = $region9
    $region8: #{tpu_custom_call.1} parent=1 // pred_region
      %31 = vsyncadd [#allocation6], 0
      %s32 = sshll.u32 %s1, 4
      %s33 = int_to_ptr.hbm [resolvable:$true] %s32
      %s34 = sshll.u32 [#allocation5], 4
      %s35 = int_to_ptr.vmem [resolvable:$true] %s34
      %40 = dma.hbm_to_vmem [thread:$0]  %s33, 16384, %s35, [#allocation6], 512, 512, 32
    $region9: #{tpu_custom_call.1} parent=1 // pred_fallthru
      _
    // Predicated region
    $region10: #{tpu_custom_call.1} parent=1 // pred_check
      _
    $region11: #{tpu_custom_call.1} parent=1 // pred_check_branch
      %42 = sbr.rel (0) target = $region13
    $region12: #{tpu_custom_call.1} parent=1 // pred_region
      %44 = vsyncadd [#allocation6], 0
      %s46 = sshll.u32 %s2, 4
      %s47 = int_to_ptr.hbm [resolvable:$true] %s46
      %s48 = sshll.u32 [#allocation7], 4
      %s49 = int_to_ptr.vmem [resolvable:$true] %s48
      %51 = dma.hbm_to_vmem [thread:$0]  %s47, 64, %s49, [#allocation6]
    $region13: #{tpu_custom_call.1} parent=1 // pred_fallthru
      _
    // Predicated region
    $region14: #{tpu_custom_call.1} parent=1 // pred_check
      _
    $region15: #{tpu_custom_call.1} parent=1 // pred_check_branch
      %53 = sbr.rel (0) target = $region17
    $region16: #{tpu_custom_call.1} parent=1 // pred_region
      %55 = vsyncadd [#allocation9], 0
      %s56 = sshll.u32 %s3, 4
      %s57 = int_to_ptr.hbm [resolvable:$true] %s56
      %s58 = sshll.u32 [#allocation8], 4
      %s59 = int_to_ptr.vmem [resolvable:$true] %s58
      %64 = dma.hbm_to_vmem [thread:$0]  %s57, 32768, %s59, [#allocation9], 512, 512, 32
    $region17: #{tpu_custom_call.1} parent=1 // pred_fallthru
      _
    // Predicated region
    $region18: #{tpu_custom_call.1} parent=1 // pred_check
      _
    $region19: #{tpu_custom_call.1} parent=1 // pred_check_branch
      %66 = sbr.rel (0) target = $region21
    $region20: #{tpu_custom_call.1} parent=1 // pred_region
      %68 = vsyncadd [#allocation9], 0
      %s70 = sshll.u32 %s4, 4
      %s71 = int_to_ptr.hbm [resolvable:$true] %s70
      %s72 = sshll.u32 [#allocation10], 4
      %s73 = int_to_ptr.vmem [resolvable:$true] %s72
      %75 = dma.hbm_to_vmem [thread:$0]  %s71, 64, %s73, [#allocation9]
    $region21: #{tpu_custom_call.1} parent=1 // pred_fallthru
      _
    // Predicated region
    $region22: #{tpu_custom_call.1} parent=1 // pred_check
      _
    $region23: #{tpu_custom_call.1} parent=1 // pred_check_branch
      %77 = sbr.rel (0) target = $region25
    $region24: #{tpu_custom_call.1} parent=1 // pred_region
      %79 = vsyncadd [#allocation12], 0
      %s80 = sshll.u32 %s5, 4
      %s81 = int_to_ptr.hbm [resolvable:$true] %s80
      %s82 = sshll.u32 [#allocation11], 4
      %s83 = int_to_ptr.vmem [resolvable:$true] %s82
      %88 = dma.hbm_to_vmem [thread:$0]  %s81, 8192, %s83, [#allocation12], 128, 128, 8
    $region25: #{tpu_custom_call.1} parent=1 // pred_fallthru
      _
    // Predicated region
    $region26: #{tpu_custom_call.1} parent=1 // pred_check
      _
    $region27: #{tpu_custom_call.1} parent=1 // pred_check_branch
      %90 = sbr.rel (0) target = $region29
    $region28: #{tpu_custom_call.1} parent=1 // pred_region
      _
    $region29: #{tpu_custom_call.1} parent=1 // pred_fallthru
      _
    // Predicated region
    $region30: #{tpu_custom_call.1} parent=1 // pred_check
      _
    $region31: #{tpu_custom_call.1} parent=1 // pred_check_branch
      %92 = sbr.rel (0) target = $region33
    $region32: #{tpu_custom_call.1} parent=1 // pred_region
      %94 = dma.done [#allocation3], 32
    $region33: #{tpu_custom_call.1} parent=1 // pred_fallthru
      _
    // Predicated region
    $region34: #{tpu_custom_call.1} parent=1 // pred_check
      _
    $region35: #{tpu_custom_call.1} parent=1 // pred_check_branch
      %96 = sbr.rel (0) target = $region37
    $region36: #{tpu_custom_call.1} parent=1 // pred_region
      %98 = dma.done [#allocation6], 16384
    $region37: #{tpu_custom_call.1} parent=1 // pred_fallthru
      _
    // Predicated region
    $region38: #{tpu_custom_call.1} parent=1 // pred_check
      _
    $region39: #{tpu_custom_call.1} parent=1 // pred_check_branch
      %100 = sbr.rel (0) target = $region41
    $region40: #{tpu_custom_call.1} parent=1 // pred_region
      %102 = dma.done [#allocation6], 64
    $region41: #{tpu_custom_call.1} parent=1 // pred_fallthru
      _
    // Predicated region
    $region42: #{tpu_custom_call.1} parent=1 // pred_check
      _
    $region43: #{tpu_custom_call.1} parent=1 // pred_check_branch
      %104 = sbr.rel (0) target = $region45
    $region44: #{tpu_custom_call.1} parent=1 // pred_region
      %106 = dma.done [#allocation9], 32768
    $region45: #{tpu_custom_call.1} parent=1 // pred_fallthru
      _
    // Predicated region
    $region46: #{tpu_custom_call.1} parent=1 // pred_check
      _
    $region47: #{tpu_custom_call.1} parent=1 // pred_check_branch
      %108 = sbr.rel (0) target = $region49
    $region48: #{tpu_custom_call.1} parent=1 // pred_region
      %110 = dma.done [#allocation9], 64
    $region49: #{tpu_custom_call.1} parent=1 // pred_fallthru
      _
    // Predicated region
    $region50: #{tpu_custom_call.1} parent=1 // pred_check
      _
    $region51: #{tpu_custom_call.1} parent=1 // pred_check_branch
      %112 = sbr.rel (0) target = $region53
    $region52: #{tpu_custom_call.1} parent=1 // pred_region
      %114 = dma.done [#allocation12], 8192
    $region53: #{tpu_custom_call.1} parent=1 // pred_fallthru
      _
    %v115 = vld [vmem:[#allocation2] sm:$0x3]
    %v116 = vld [vmem:[#allocation5] sm:$0xff]
    %v117 = vld [vmem:[#allocation5 + $0x8] sm:$0xff]
    %v118 = vld [vmem:[#allocation5 + $0x10] sm:$0xff]
    %v119 = vld [vmem:[#allocation5 + $0x18] sm:$0xff]
    %v120 = vld [vmem:[#allocation5 + $0x20] sm:$0xff]
    %v121 = vld [vmem:[#allocation5 + $0x28] sm:$0xff]
    %v122 = vld [vmem:[#allocation5 + $0x30] sm:$0xff]
    %v123 = vld [vmem:[#allocation5 + $0x38] sm:$0xff]
    %v124 = vld [vmem:[#allocation5 + $0x40] sm:$0xff]
    %v125 = vld [vmem:[#allocation5 + $0x48] sm:$0xff]
    %v126 = vld [vmem:[#allocation5 + $0x50] sm:$0xff]
    %v127 = vld [vmem:[#allocation5 + $0x58] sm:$0xff]
    %v128 = vld [vmem:[#allocation5 + $0x60] sm:$0xff]
    %v129 = vld [vmem:[#allocation5 + $0x68] sm:$0xff]
    %v130 = vld [vmem:[#allocation5 + $0x70] sm:$0xff]
    %v131 = vld [vmem:[#allocation5 + $0x78] sm:$0xff]
    %v132 = vld [vmem:[#allocation5 + $0x80] sm:$0xff]
    %v133 = vld [vmem:[#allocation5 + $0x88] sm:$0xff]
    %v134 = vld [vmem:[#allocation5 + $0x90] sm:$0xff]
    %v135 = vld [vmem:[#allocation5 + $0x98] sm:$0xff]
    %v136 = vld [vmem:[#allocation5 + $0xa0] sm:$0xff]
    %v137 = vld [vmem:[#allocation5 + $0xa8] sm:$0xff]
    %v138 = vld [vmem:[#allocation5 + $0xb0] sm:$0xff]
    %v139 = vld [vmem:[#allocation5 + $0xb8] sm:$0xff]
    %v140 = vld [vmem:[#allocation5 + $0xc0] sm:$0xff]
    %v141 = vld [vmem:[#allocation5 + $0xc8] sm:$0xff]
    %v142 = vld [vmem:[#allocation5 + $0xd0] sm:$0xff]
    %v143 = vld [vmem:[#allocation5 + $0xd8] sm:$0xff]
    %v144 = vld [vmem:[#allocation5 + $0xe0] sm:$0xff]
    %v145 = vld [vmem:[#allocation5 + $0xe8] sm:$0xff]
    %v146 = vld [vmem:[#allocation5 + $0xf0] sm:$0xff]
    %v147 = vld [vmem:[#allocation5 + $0xf8] sm:$0xff]
    %v148 = vld [vmem:[#allocation5 + $0x100] sm:$0xff]
    %v149 = vld [vmem:[#allocation5 + $0x108] sm:$0xff]
    %v150 = vld [vmem:[#allocation5 + $0x110] sm:$0xff]
    %v151 = vld [vmem:[#allocation5 + $0x118] sm:$0xff]
    %v152 = vld [vmem:[#allocation5 + $0x120] sm:$0xff]
    %v153 = vld [vmem:[#allocation5 + $0x128] sm:$0xff]
    %v154 = vld [vmem:[#allocation5 + $0x130] sm:$0xff]
    %v155 = vld [vmem:[#allocation5 + $0x138] sm:$0xff]
    %v156 = vld [vmem:[#allocation5 + $0x140] sm:$0xff]
    %v157 = vld [vmem:[#allocation5 + $0x148] sm:$0xff]
    %v158 = vld [vmem:[#allocation5 + $0x150] sm:$0xff]
    %v159 = vld [vmem:[#allocation5 + $0x158] sm:$0xff]
    %v160 = vld [vmem:[#allocation5 + $0x160] sm:$0xff]
    %v161 = vld [vmem:[#allocation5 + $0x168] sm:$0xff]
    %v162 = vld [vmem:[#allocation5 + $0x170] sm:$0xff]
    %v163 = vld [vmem:[#allocation5 + $0x178] sm:$0xff]
    %v164 = vld [vmem:[#allocation5 + $0x180] sm:$0xff]
    %v165 = vld [vmem:[#allocation5 + $0x188] sm:$0xff]
    %v166 = vld [vmem:[#allocation5 + $0x190] sm:$0xff]
    %v167 = vld [vmem:[#allocation5 + $0x198] sm:$0xff]
    %v168 = vld [vmem:[#allocation5 + $0x1a0] sm:$0xff]
    %v169 = vld [vmem:[#allocation5 + $0x1a8] sm:$0xff]
    %v170 = vld [vmem:[#allocation5 + $0x1b0] sm:$0xff]
    %v171 = vld [vmem:[#allocation5 + $0x1b8] sm:$0xff]
    %v172 = vld [vmem:[#allocation5 + $0x1c0] sm:$0xff]
    %v173 = vld [vmem:[#allocation5 + $0x1c8] sm:$0xff]
    %v174 = vld [vmem:[#allocation5 + $0x1d0] sm:$0xff]
    %v175 = vld [vmem:[#allocation5 + $0x1d8] sm:$0xff]
    %v176 = vld [vmem:[#allocation5 + $0x1e0] sm:$0xff]
    %v177 = vld [vmem:[#allocation5 + $0x1e8] sm:$0xff]
    %v178 = vld [vmem:[#allocation5 + $0x1f0] sm:$0xff]
    %v179 = vld [vmem:[#allocation5 + $0x1f8] sm:$0xff]
    %v180 = vld [vmem:[#allocation5 + $0x200] sm:$0xff]
    %v181 = vld [vmem:[#allocation5 + $0x208] sm:$0xff]
    %v182 = vld [vmem:[#allocation5 + $0x210] sm:$0xff]
    %v183 = vld [vmem:[#allocation5 + $0x218] sm:$0xff]
    %v184 = vld [vmem:[#allocation5 + $0x220] sm:$0xff]
    %v185 = vld [vmem:[#allocation5 + $0x228] sm:$0xff]
    %v186 = vld [vmem:[#allocation5 + $0x230] sm:$0xff]
    %v187 = vld [vmem:[#allocation5 + $0x238] sm:$0xff]
    %v188 = vld [vmem:[#allocation5 + $0x240] sm:$0xff]
    %v189 = vld [vmem:[#allocation5 + $0x248] sm:$0xff]
    %v190 = vld [vmem:[#allocation5 + $0x250] sm:$0xff]
    %v191 = vld [vmem:[#allocation5 + $0x258] sm:$0xff]
    %v192 = vld [vmem:[#allocation5 + $0x260] sm:$0xff]
    %v193 = vld [vmem:[#allocation5 + $0x268] sm:$0xff]
    %v194 = vld [vmem:[#allocation5 + $0x270] sm:$0xff]
    %v195 = vld [vmem:[#allocation5 + $0x278] sm:$0xff]
    %v196 = vld [vmem:[#allocation5 + $0x280] sm:$0xff]
    %v197 = vld [vmem:[#allocation5 + $0x288] sm:$0xff]
    %v198 = vld [vmem:[#allocation5 + $0x290] sm:$0xff]
    %v199 = vld [vmem:[#allocation5 + $0x298] sm:$0xff]
    %v200 = vld [vmem:[#allocation5 + $0x2a0] sm:$0xff]
    %v201 = vld [vmem:[#allocation5 + $0x2a8] sm:$0xff]
    %v202 = vld [vmem:[#allocation5 + $0x2b0] sm:$0xff]
    %v203 = vld [vmem:[#allocation5 + $0x2b8] sm:$0xff]
    %v204 = vld [vmem:[#allocation5 + $0x2c0] sm:$0xff]
    %v205 = vld [vmem:[#allocation5 + $0x2c8] sm:$0xff]
    %v206 = vld [vmem:[#allocation5 + $0x2d0] sm:$0xff]
    %v207 = vld [vmem:[#allocation5 + $0x2d8] sm:$0xff]
    %v208 = vld [vmem:[#allocation5 + $0x2e0] sm:$0xff]
    %v209 = vld [vmem:[#allocation5 + $0x2e8] sm:$0xff]
    %v210 = vld [vmem:[#allocation5 + $0x2f0] sm:$0xff]
    %v211 = vld [vmem:[#allocation5 + $0x2f8] sm:$0xff]
    %v212 = vld [vmem:[#allocation5 + $0x300] sm:$0xff]
    %v213 = vld [vmem:[#allocation5 + $0x308] sm:$0xff]
    %v214 = vld [vmem:[#allocation5 + $0x310] sm:$0xff]
    %v215 = vld [vmem:[#allocation5 + $0x318] sm:$0xff]
    %v216 = vld [vmem:[#allocation5 + $0x320] sm:$0xff]
    %v217 = vld [vmem:[#allocation5 + $0x328] sm:$0xff]
    %v218 = vld [vmem:[#allocation5 + $0x330] sm:$0xff]
    %v219 = vld [vmem:[#allocation5 + $0x338] sm:$0xff]
    %v220 = vld [vmem:[#allocation5 + $0x340] sm:$0xff]
    %v221 = vld [vmem:[#allocation5 + $0x348] sm:$0xff]
    %v222 = vld [vmem:[#allocation5 + $0x350] sm:$0xff]
    %v223 = vld [vmem:[#allocation5 + $0x358] sm:$0xff]
    %v224 = vld [vmem:[#allocation5 + $0x360] sm:$0xff]
    %v225 = vld [vmem:[#allocation5 + $0x368] sm:$0xff]
    %v226 = vld [vmem:[#allocation5 + $0x370] sm:$0xff]
    %v227 = vld [vmem:[#allocation5 + $0x378] sm:$0xff]
    %v228 = vld [vmem:[#allocation5 + $0x380] sm:$0xff]
    %v229 = vld [vmem:[#allocation5 + $0x388] sm:$0xff]
    %v230 = vld [vmem:[#allocation5 + $0x390] sm:$0xff]
    %v231 = vld [vmem:[#allocation5 + $0x398] sm:$0xff]
    %v232 = vld [vmem:[#allocation5 + $0x3a0] sm:$0xff]
    %v233 = vld [vmem:[#allocation5 + $0x3a8] sm:$0xff]
    %v234 = vld [vmem:[#allocation5 + $0x3b0] sm:$0xff]
    %v235 = vld [vmem:[#allocation5 + $0x3b8] sm:$0xff]
    %v236 = vld [vmem:[#allocation5 + $0x3c0] sm:$0xff]
    %v237 = vld [vmem:[#allocation5 + $0x3c8] sm:$0xff]
    %v238 = vld [vmem:[#allocation5 + $0x3d0] sm:$0xff]
    %v239 = vld [vmem:[#allocation5 + $0x3d8] sm:$0xff]
    %v240 = vld [vmem:[#allocation5 + $0x3e0] sm:$0xff]
    %v241 = vld [vmem:[#allocation5 + $0x3e8] sm:$0xff]
    %v242 = vld [vmem:[#allocation5 + $0x3f0] sm:$0xff]
    %v243 = vld [vmem:[#allocation5 + $0x3f8] sm:$0xff]
    %v244 = vld [vmem:[#allocation7] sm:$0xf]
    %v246 = vperm.slane %v115, 0
    %v247 = vperm.slane %v115, 1
    %v251 = vperm.slane %v244, 0
    %v252 = vperm.slane %v244, 1
    %v253 = vperm.slane %v244, 2
    %v254 = vperm.slane %v244, 3
    %259 = vmatpush.msra.mxu0 %v176
    %260 = vmatpush.msra.mxu0 %v172
    %261 = vmatpush.msra.mxu0 %v168
    %262 = vmatpush.msra.mxu0 %v164
    %263 = vmatpush.msra.mxu0 %v160
    %264 = vmatpush.msra.mxu0 %v156
    %265 = vmatpush.msra.mxu0 %v152
    %266 = vmatpush.msra.mxu0 %v148
    %267 = vmatpush.msra.mxu0 %v144
    %268 = vmatpush.msra.mxu0 %v140
    %269 = vmatpush.msra.mxu0 %v136
    %270 = vmatpush.msra.mxu0 %v132
    %271 = vmatpush.msra.mxu0 %v128
    %272 = vmatpush.msra.mxu0 %v124
    %273 = vmatpush.msra.mxu0 %v120
    %274 = vmatpush.msra.mxu0 %v116
    %275 = vmatmul.f32.gmra.mxu0 %v246
    %v276 = vpop.f32.mrf.mxu0
    %v277 = vadd.f32 %v251, %v276
    %278 = vdwg.mxu0
    %279 = vmatpush.msra.mxu0 %v240
    %280 = vmatpush.msra.mxu0 %v236
    %281 = vmatpush.msra.mxu0 %v232
    %282 = vmatpush.msra.mxu0 %v228
    %283 = vmatpush.msra.mxu0 %v224
    %284 = vmatpush.msra.mxu0 %v220
    %285 = vmatpush.msra.mxu0 %v216
    %286 = vmatpush.msra.mxu0 %v212
    %287 = vmatpush.msra.mxu0 %v208
    %288 = vmatpush.msra.mxu0 %v204
    %289 = vmatpush.msra.mxu0 %v200
    %290 = vmatpush.msra.mxu0 %v196
    %291 = vmatpush.msra.mxu0 %v192
    %292 = vmatpush.msra.mxu0 %v188
    %293 = vmatpush.msra.mxu0 %v184
    %294 = vmatpush.msra.mxu0 %v180
    %295 = vmatmul.f32.gmra.mxu0 %v247
    %v296 = vpop.f32.mrf.mxu0
    %v297 = vadd.f32 %v277, %v296
    %298 = vdwg.mxu0
    %299 = vmatpush.msra.mxu0 %v177
    %300 = vmatpush.msra.mxu0 %v173
    %301 = vmatpush.msra.mxu0 %v169
    %302 = vmatpush.msra.mxu0 %v165
    %303 = vmatpush.msra.mxu0 %v161
    %304 = vmatpush.msra.mxu0 %v157
    %305 = vmatpush.msra.mxu0 %v153
    %306 = vmatpush.msra.mxu0 %v149
    %307 = vmatpush.msra.mxu0 %v145
    %308 = vmatpush.msra.mxu0 %v141
    %309 = vmatpush.msra.mxu0 %v137
    %310 = vmatpush.msra.mxu0 %v133
    %311 = vmatpush.msra.mxu0 %v129
    %312 = vmatpush.msra.mxu0 %v125
    %313 = vmatpush.msra.mxu0 %v121
    %314 = vmatpush.msra.mxu0 %v117
    %315 = vmatmul.f32.gmra.mxu0 %v246
    %v316 = vpop.f32.mrf.mxu0
    %v317 = vadd.f32 %v252, %v316
    %318 = vdwg.mxu0
    %319 = vmatpush.msra.mxu0 %v241
    %320 = vmatpush.msra.mxu0 %v237
    %321 = vmatpush.msra.mxu0 %v233
    %322 = vmatpush.msra.mxu0 %v229
    %323 = vmatpush.msra.mxu0 %v225
    %324 = vmatpush.msra.mxu0 %v221
    %325 = vmatpush.msra.mxu0 %v217
    %326 = vmatpush.msra.mxu0 %v213
    %327 = vmatpush.msra.mxu0 %v209
    %328 = vmatpush.msra.mxu0 %v205
    %329 = vmatpush.msra.mxu0 %v201
    %330 = vmatpush.msra.mxu0 %v197
    %331 = vmatpush.msra.mxu0 %v193
    %332 = vmatpush.msra.mxu0 %v189
    %333 = vmatpush.msra.mxu0 %v185
    %334 = vmatpush.msra.mxu0 %v181
    %335 = vmatmul.f32.gmra.mxu0 %v247
    %v336 = vpop.f32.mrf.mxu0
    %v337 = vadd.f32 %v317, %v336
    %338 = vdwg.mxu0
    %339 = vmatpush.msra.mxu0 %v178
    %340 = vmatpush.msra.mxu0 %v174
    %341 = vmatpush.msra.mxu0 %v170
    %342 = vmatpush.msra.mxu0 %v166
    %343 = vmatpush.msra.mxu0 %v162
    %344 = vmatpush.msra.mxu0 %v158
    %345 = vmatpush.msra.mxu0 %v154
    %346 = vmatpush.msra.mxu0 %v150
    %347 = vmatpush.msra.mxu0 %v146
    %348 = vmatpush.msra.mxu0 %v142
    %349 = vmatpush.msra.mxu0 %v138
    %350 = vmatpush.msra.mxu0 %v134
    %351 = vmatpush.msra.mxu0 %v130
    %352 = vmatpush.msra.mxu0 %v126
    %353 = vmatpush.msra.mxu0 %v122
    %354 = vmatpush.msra.mxu0 %v118
    %355 = vmatmul.f32.gmra.mxu0 %v246
    %v356 = vpop.f32.mrf.mxu0
    %v357 = vadd.f32 %v253, %v356
    %358 = vdwg.mxu0
    %359 = vmatpush.msra.mxu0 %v242
    %360 = vmatpush.msra.mxu0 %v238
    %361 = vmatpush.msra.mxu0 %v234
    %362 = vmatpush.msra.mxu0 %v230
    %363 = vmatpush.msra.mxu0 %v226
    %364 = vmatpush.msra.mxu0 %v222
    %365 = vmatpush.msra.mxu0 %v218
    %366 = vmatpush.msra.mxu0 %v214
    %367 = vmatpush.msra.mxu0 %v210
    %368 = vmatpush.msra.mxu0 %v206
    %369 = vmatpush.msra.mxu0 %v202
    %370 = vmatpush.msra.mxu0 %v198
    %371 = vmatpush.msra.mxu0 %v194
    %372 = vmatpush.msra.mxu0 %v190
    %373 = vmatpush.msra.mxu0 %v186
    %374 = vmatpush.msra.mxu0 %v182
    %375 = vmatmul.f32.gmra.mxu0 %v247
    %v376 = vpop.f32.mrf.mxu0
    %v377 = vadd.f32 %v357, %v376
    %378 = vdwg.mxu0
    %379 = vmatpush.msra.mxu0 %v179
    %380 = vmatpush.msra.mxu0 %v175
    %381 = vmatpush.msra.mxu0 %v171
    %382 = vmatpush.msra.mxu0 %v167
    %383 = vmatpush.msra.mxu0 %v163
    %384 = vmatpush.msra.mxu0 %v159
    %385 = vmatpush.msra.mxu0 %v155
    %386 = vmatpush.msra.mxu0 %v151
    %387 = vmatpush.msra.mxu0 %v147
    %388 = vmatpush.msra.mxu0 %v143
    %389 = vmatpush.msra.mxu0 %v139
    %390 = vmatpush.msra.mxu0 %v135
    %391 = vmatpush.msra.mxu0 %v131
    %392 = vmatpush.msra.mxu0 %v127
    %393 = vmatpush.msra.mxu0 %v123
    %394 = vmatpush.msra.mxu0 %v119
    %395 = vmatmul.f32.gmra.mxu0 %v246
    %v396 = vpop.f32.mrf.mxu0
    %v397 = vadd.f32 %v254, %v396
    %398 = vdwg.mxu0
    %399 = vmatpush.msra.mxu0 %v243
    %400 = vmatpush.msra.mxu0 %v239
    %401 = vmatpush.msra.mxu0 %v235
    %402 = vmatpush.msra.mxu0 %v231
    %403 = vmatpush.msra.mxu0 %v227
    %404 = vmatpush.msra.mxu0 %v223
    %405 = vmatpush.msra.mxu0 %v219
    %406 = vmatpush.msra.mxu0 %v215
    %407 = vmatpush.msra.mxu0 %v211
    %408 = vmatpush.msra.mxu0 %v207
    %409 = vmatpush.msra.mxu0 %v203
    %410 = vmatpush.msra.mxu0 %v199
    %411 = vmatpush.msra.mxu0 %v195
    %412 = vmatpush.msra.mxu0 %v191
    %413 = vmatpush.msra.mxu0 %v187
    %414 = vmatpush.msra.mxu0 %v183
    %415 = vmatmul.f32.gmra.mxu0 %v247
    %v416 = vpop.f32.mrf.mxu0
    %v417 = vadd.f32 %v397, %v416
    %418 = vdwg.mxu0
    %v419 = vmax.f32 %v297, 0.0
    %v420 = vmax.f32 %v337, 0.0
    %v421 = vmax.f32 %v377, 0.0
    %v422 = vmax.f32 %v417, 0.0
    %v423 = vld [vmem:[#allocation8] sm:$0xff]
    %v424 = vld [vmem:[#allocation8 + $0x8] sm:$0xff]
    %v425 = vld [vmem:[#allocation8 + $0x10] sm:$0xff]
    %v426 = vld [vmem:[#allocation8 + $0x18] sm:$0xff]
    %v427 = vld [vmem:[#allocation8 + $0x20] sm:$0xff]
    %v428 = vld [vmem:[#allocation8 + $0x28] sm:$0xff]
    %v429 = vld [vmem:[#allocation8 + $0x30] sm:$0xff]
    %v430 = vld [vmem:[#allocation8 + $0x38] sm:$0xff]
    %v431 = vld [vmem:[#allocation8 + $0x40] sm:$0xff]
    %v432 = vld [vmem:[#allocation8 + $0x48] sm:$0xff]
    %v433 = vld [vmem:[#allocation8 + $0x50] sm:$0xff]
    %v434 = vld [vmem:[#allocation8 + $0x58] sm:$0xff]
    %v435 = vld [vmem:[#allocation8 + $0x60] sm:$0xff]
    %v436 = vld [vmem:[#allocation8 + $0x68] sm:$0xff]
    %v437 = vld [vmem:[#allocation8 + $0x70] sm:$0xff]
    %v438 = vld [vmem:[#allocation8 + $0x78] sm:$0xff]
    %v439 = vld [vmem:[#allocation8 + $0x80] sm:$0xff]
    %v440 = vld [vmem:[#allocation8 + $0x88] sm:$0xff]
    %v441 = vld [vmem:[#allocation8 + $0x90] sm:$0xff]
    %v442 = vld [vmem:[#allocation8 + $0x98] sm:$0xff]
    %v443 = vld [vmem:[#allocation8 + $0xa0] sm:$0xff]
    %v444 = vld [vmem:[#allocation8 + $0xa8] sm:$0xff]
    %v445 = vld [vmem:[#allocation8 + $0xb0] sm:$0xff]
    %v446 = vld [vmem:[#allocation8 + $0xb8] sm:$0xff]
    %v447 = vld [vmem:[#allocation8 + $0xc0] sm:$0xff]
    %v448 = vld [vmem:[#allocation8 + $0xc8] sm:$0xff]
    %v449 = vld [vmem:[#allocation8 + $0xd0] sm:$0xff]
    %v450 = vld [vmem:[#allocation8 + $0xd8] sm:$0xff]
    %v451 = vld [vmem:[#allocation8 + $0xe0] sm:$0xff]
    %v452 = vld [vmem:[#allocation8 + $0xe8] sm:$0xff]
    %v453 = vld [vmem:[#allocation8 + $0xf0] sm:$0xff]
    %v454 = vld [vmem:[#allocation8 + $0xf8] sm:$0xff]
    %v455 = vld [vmem:[#allocation8 + $0x100] sm:$0xff]
    %v456 = vld [vmem:[#allocation8 + $0x108] sm:$0xff]
    %v457 = vld [vmem:[#allocation8 + $0x110] sm:$0xff]
    %v458 = vld [vmem:[#allocation8 + $0x118] sm:$0xff]
    %v459 = vld [vmem:[#allocation8 + $0x120] sm:$0xff]
    %v460 = vld [vmem:[#allocation8 + $0x128] sm:$0xff]
    %v461 = vld [vmem:[#allocation8 + $0x130] sm:$0xff]
    %v462 = vld [vmem:[#allocation8 + $0x138] sm:$0xff]
    %v463 = vld [vmem:[#allocation8 + $0x140] sm:$0xff]
    %v464 = vld [vmem:[#allocation8 + $0x148] sm:$0xff]
    %v465 = vld [vmem:[#allocation8 + $0x150] sm:$0xff]
    %v466 = vld [vmem:[#allocation8 + $0x158] sm:$0xff]
    %v467 = vld [vmem:[#allocation8 + $0x160] sm:$0xff]
    %v468 = vld [vmem:[#allocation8 + $0x168] sm:$0xff]
    %v469 = vld [vmem:[#allocation8 + $0x170] sm:$0xff]
    %v470 = vld [vmem:[#allocation8 + $0x178] sm:$0xff]
    %v471 = vld [vmem:[#allocation8 + $0x180] sm:$0xff]
    %v472 = vld [vmem:[#allocation8 + $0x188] sm:$0xff]
    %v473 = vld [vmem:[#allocation8 + $0x190] sm:$0xff]
    %v474 = vld [vmem:[#allocation8 + $0x198] sm:$0xff]
    %v475 = vld [vmem:[#allocation8 + $0x1a0] sm:$0xff]
    %v476 = vld [vmem:[#allocation8 + $0x1a8] sm:$0xff]
    %v477 = vld [vmem:[#allocation8 + $0x1b0] sm:$0xff]
    %v478 = vld [vmem:[#allocation8 + $0x1b8] sm:$0xff]
    %v479 = vld [vmem:[#allocation8 + $0x1c0] sm:$0xff]
    %v480 = vld [vmem:[#allocation8 + $0x1c8] sm:$0xff]
    %v481 = vld [vmem:[#allocation8 + $0x1d0] sm:$0xff]
    %v482 = vld [vmem:[#allocation8 + $0x1d8] sm:$0xff]
    %v483 = vld [vmem:[#allocation8 + $0x1e0] sm:$0xff]
    %v484 = vld [vmem:[#allocation8 + $0x1e8] sm:$0xff]
    %v485 = vld [vmem:[#allocation8 + $0x1f0] sm:$0xff]
    %v486 = vld [vmem:[#allocation8 + $0x1f8] sm:$0xff]
    %v487 = vld [vmem:[#allocation8 + $0x200] sm:$0xff]
    %v488 = vld [vmem:[#allocation8 + $0x208] sm:$0xff]
    %v489 = vld [vmem:[#allocation8 + $0x210] sm:$0xff]
    %v490 = vld [vmem:[#allocation8 + $0x218] sm:$0xff]
    %v491 = vld [vmem:[#allocation8 + $0x220] sm:$0xff]
    %v492 = vld [vmem:[#allocation8 + $0x228] sm:$0xff]
    %v493 = vld [vmem:[#allocation8 + $0x230] sm:$0xff]
    %v494 = vld [vmem:[#allocation8 + $0x238] sm:$0xff]
    %v495 = vld [vmem:[#allocation8 + $0x240] sm:$0xff]
    %v496 = vld [vmem:[#allocation8 + $0x248] sm:$0xff]
    %v497 = vld [vmem:[#allocation8 + $0x250] sm:$0xff]
    %v498 = vld [vmem:[#allocation8 + $0x258] sm:$0xff]
    %v499 = vld [vmem:[#allocation8 + $0x260] sm:$0xff]
    %v500 = vld [vmem:[#allocation8 + $0x268] sm:$0xff]
    %v501 = vld [vmem:[#allocation8 + $0x270] sm:$0xff]
    %v502 = vld [vmem:[#allocation8 + $0x278] sm:$0xff]
    %v503 = vld [vmem:[#allocation8 + $0x280] sm:$0xff]
    %v504 = vld [vmem:[#allocation8 + $0x288] sm:$0xff]
    %v505 = vld [vmem:[#allocation8 + $0x290] sm:$0xff]
    %v506 = vld [vmem:[#allocation8 + $0x298] sm:$0xff]
    %v507 = vld [vmem:[#allocation8 + $0x2a0] sm:$0xff]
    %v508 = vld [vmem:[#allocation8 + $0x2a8] sm:$0xff]
    %v509 = vld [vmem:[#allocation8 + $0x2b0] sm:$0xff]
    %v510 = vld [vmem:[#allocation8 + $0x2b8] sm:$0xff]
    %v511 = vld [vmem:[#allocation8 + $0x2c0] sm:$0xff]
    %v512 = vld [vmem:[#allocation8 + $0x2c8] sm:$0xff]
    %v513 = vld [vmem:[#allocation8 + $0x2d0] sm:$0xff]
    %v514 = vld [vmem:[#allocation8 + $0x2d8] sm:$0xff]
    %v515 = vld [vmem:[#allocation8 + $0x2e0] sm:$0xff]
    %v516 = vld [vmem:[#allocation8 + $0x2e8] sm:$0xff]
    %v517 = vld [vmem:[#allocation8 + $0x2f0] sm:$0xff]
    %v518 = vld [vmem:[#allocation8 + $0x2f8] sm:$0xff]
    %v519 = vld [vmem:[#allocation8 + $0x300] sm:$0xff]
    %v520 = vld [vmem:[#allocation8 + $0x308] sm:$0xff]
    %v521 = vld [vmem:[#allocation8 + $0x310] sm:$0xff]
    %v522 = vld [vmem:[#allocation8 + $0x318] sm:$0xff]
    %v523 = vld [vmem:[#allocation8 + $0x320] sm:$0xff]
    %v524 = vld [vmem:[#allocation8 + $0x328] sm:$0xff]
    %v525 = vld [vmem:[#allocation8 + $0x330] sm:$0xff]
    %v526 = vld [vmem:[#allocation8 + $0x338] sm:$0xff]
    %v527 = vld [vmem:[#allocation8 + $0x340] sm:$0xff]
    %v528 = vld [vmem:[#allocation8 + $0x348] sm:$0xff]
    %v529 = vld [vmem:[#allocation8 + $0x350] sm:$0xff]
    %v530 = vld [vmem:[#allocation8 + $0x358] sm:$0xff]
    %v531 = vld [vmem:[#allocation8 + $0x360] sm:$0xff]
    %v532 = vld [vmem:[#allocation8 + $0x368] sm:$0xff]
    %v533 = vld [vmem:[#allocation8 + $0x370] sm:$0xff]
    %v534 = vld [vmem:[#allocation8 + $0x378] sm:$0xff]
    %v535 = vld [vmem:[#allocation8 + $0x380] sm:$0xff]
    %v536 = vld [vmem:[#allocation8 + $0x388] sm:$0xff]
    %v537 = vld [vmem:[#allocation8 + $0x390] sm:$0xff]
    %v538 = vld [vmem:[#allocation8 + $0x398] sm:$0xff]
    %v539 = vld [vmem:[#allocation8 + $0x3a0] sm:$0xff]
    %v540 = vld [vmem:[#allocation8 + $0x3a8] sm:$0xff]
    %v541 = vld [vmem:[#allocation8 + $0x3b0] sm:$0xff]
    %v542 = vld [vmem:[#allocation8 + $0x3b8] sm:$0xff]
    %v543 = vld [vmem:[#allocation8 + $0x3c0] sm:$0xff]
    %v544 = vld [vmem:[#allocation8 + $0x3c8] sm:$0xff]
    %v545 = vld [vmem:[#allocation8 + $0x3d0] sm:$0xff]
    %v546 = vld [vmem:[#allocation8 + $0x3d8] sm:$0xff]
    %v547 = vld [vmem:[#allocation8 + $0x3e0] sm:$0xff]
    %v548 = vld [vmem:[#allocation8 + $0x3e8] sm:$0xff]
    %v549 = vld [vmem:[#allocation8 + $0x3f0] sm:$0xff]
    %v550 = vld [vmem:[#allocation8 + $0x3f8] sm:$0xff]
    %v551 = vld [vmem:[#allocation8 + $0x400] sm:$0xff]
    %v552 = vld [vmem:[#allocation8 + $0x408] sm:$0xff]
    %v553 = vld [vmem:[#allocation8 + $0x410] sm:$0xff]
    %v554 = vld [vmem:[#allocation8 + $0x418] sm:$0xff]
    %v555 = vld [vmem:[#allocation8 + $0x420] sm:$0xff]
    %v556 = vld [vmem:[#allocation8 + $0x428] sm:$0xff]
    %v557 = vld [vmem:[#allocation8 + $0x430] sm:$0xff]
    %v558 = vld [vmem:[#allocation8 + $0x438] sm:$0xff]
    %v559 = vld [vmem:[#allocation8 + $0x440] sm:$0xff]
    %v560 = vld [vmem:[#allocation8 + $0x448] sm:$0xff]
    %v561 = vld [vmem:[#allocation8 + $0x450] sm:$0xff]
    %v562 = vld [vmem:[#allocation8 + $0x458] sm:$0xff]
    %v563 = vld [vmem:[#allocation8 + $0x460] sm:$0xff]
    %v564 = vld [vmem:[#allocation8 + $0x468] sm:$0xff]
    %v565 = vld [vmem:[#allocation8 + $0x470] sm:$0xff]
    %v566 = vld [vmem:[#allocation8 + $0x478] sm:$0xff]
    %v567 = vld [vmem:[#allocation8 + $0x480] sm:$0xff]
    %v568 = vld [vmem:[#allocation8 + $0x488] sm:$0xff]
    %v569 = vld [vmem:[#allocation8 + $0x490] sm:$0xff]
    %v570 = vld [vmem:[#allocation8 + $0x498] sm:$0xff]
    %v571 = vld [vmem:[#allocation8 + $0x4a0] sm:$0xff]
    %v572 = vld [vmem:[#allocation8 + $0x4a8] sm:$0xff]
    %v573 = vld [vmem:[#allocation8 + $0x4b0] sm:$0xff]
    %v574 = vld [vmem:[#allocation8 + $0x4b8] sm:$0xff]
    %v575 = vld [vmem:[#allocation8 + $0x4c0] sm:$0xff]
    %v576 = vld [vmem:[#allocation8 + $0x4c8] sm:$0xff]
    %v577 = vld [vmem:[#allocation8 + $0x4d0] sm:$0xff]
    %v578 = vld [vmem:[#allocation8 + $0x4d8] sm:$0xff]
    %v579 = vld [vmem:[#allocation8 + $0x4e0] sm:$0xff]
    %v580 = vld [vmem:[#allocation8 + $0x4e8] sm:$0xff]
    %v581 = vld [vmem:[#allocation8 + $0x4f0] sm:$0xff]
    %v582 = vld [vmem:[#allocation8 + $0x4f8] sm:$0xff]
    %v583 = vld [vmem:[#allocation8 + $0x500] sm:$0xff]
    %v584 = vld [vmem:[#allocation8 + $0x508] sm:$0xff]
    %v585 = vld [vmem:[#allocation8 + $0x510] sm:$0xff]
    %v586 = vld [vmem:[#allocation8 + $0x518] sm:$0xff]
    %v587 = vld [vmem:[#allocation8 + $0x520] sm:$0xff]
    %v588 = vld [vmem:[#allocation8 + $0x528] sm:$0xff]
    %v589 = vld [vmem:[#allocation8 + $0x530] sm:$0xff]
    %v590 = vld [vmem:[#allocation8 + $0x538] sm:$0xff]
    %v591 = vld [vmem:[#allocation8 + $0x540] sm:$0xff]
    %v592 = vld [vmem:[#allocation8 + $0x548] sm:$0xff]
    %v593 = vld [vmem:[#allocation8 + $0x550] sm:$0xff]
    %v594 = vld [vmem:[#allocation8 + $0x558] sm:$0xff]
    %v595 = vld [vmem:[#allocation8 + $0x560] sm:$0xff]
    %v596 = vld [vmem:[#allocation8 + $0x568] sm:$0xff]
    %v597 = vld [vmem:[#allocation8 + $0x570] sm:$0xff]
    %v598 = vld [vmem:[#allocation8 + $0x578] sm:$0xff]
    %v599 = vld [vmem:[#allocation8 + $0x580] sm:$0xff]
    %v600 = vld [vmem:[#allocation8 + $0x588] sm:$0xff]
    %v601 = vld [vmem:[#allocation8 + $0x590] sm:$0xff]
    %v602 = vld [vmem:[#allocation8 + $0x598] sm:$0xff]
    %v603 = vld [vmem:[#allocation8 + $0x5a0] sm:$0xff]
    %v604 = vld [vmem:[#allocation8 + $0x5a8] sm:$0xff]
    %v605 = vld [vmem:[#allocation8 + $0x5b0] sm:$0xff]
    %v606 = vld [vmem:[#allocation8 + $0x5b8] sm:$0xff]
    %v607 = vld [vmem:[#allocation8 + $0x5c0] sm:$0xff]
    %v608 = vld [vmem:[#allocation8 + $0x5c8] sm:$0xff]
    %v609 = vld [vmem:[#allocation8 + $0x5d0] sm:$0xff]
    %v610 = vld [vmem:[#allocation8 + $0x5d8] sm:$0xff]
    %v611 = vld [vmem:[#allocation8 + $0x5e0] sm:$0xff]
    %v612 = vld [vmem:[#allocation8 + $0x5e8] sm:$0xff]
    %v613 = vld [vmem:[#allocation8 + $0x5f0] sm:$0xff]
    %v614 = vld [vmem:[#allocation8 + $0x5f8] sm:$0xff]
    %v615 = vld [vmem:[#allocation8 + $0x600] sm:$0xff]
    %v616 = vld [vmem:[#allocation8 + $0x608] sm:$0xff]
    %v617 = vld [vmem:[#allocation8 + $0x610] sm:$0xff]
    %v618 = vld [vmem:[#allocation8 + $0x618] sm:$0xff]
    %v619 = vld [vmem:[#allocation8 + $0x620] sm:$0xff]
    %v620 = vld [vmem:[#allocation8 + $0x628] sm:$0xff]
    %v621 = vld [vmem:[#allocation8 + $0x630] sm:$0xff]
    %v622 = vld [vmem:[#allocation8 + $0x638] sm:$0xff]
    %v623 = vld [vmem:[#allocation8 + $0x640] sm:$0xff]
    %v624 = vld [vmem:[#allocation8 + $0x648] sm:$0xff]
    %v625 = vld [vmem:[#allocation8 + $0x650] sm:$0xff]
    %v626 = vld [vmem:[#allocation8 + $0x658] sm:$0xff]
    %v627 = vld [vmem:[#allocation8 + $0x660] sm:$0xff]
    %v628 = vld [vmem:[#allocation8 + $0x668] sm:$0xff]
    %v629 = vld [vmem:[#allocation8 + $0x670] sm:$0xff]
    %v630 = vld [vmem:[#allocation8 + $0x678] sm:$0xff]
    %v631 = vld [vmem:[#allocation8 + $0x680] sm:$0xff]
    %v632 = vld [vmem:[#allocation8 + $0x688] sm:$0xff]
    %v633 = vld [vmem:[#allocation8 + $0x690] sm:$0xff]
    %v634 = vld [vmem:[#allocation8 + $0x698] sm:$0xff]
    %v635 = vld [vmem:[#allocation8 + $0x6a0] sm:$0xff]
    %v636 = vld [vmem:[#allocation8 + $0x6a8] sm:$0xff]
    %v637 = vld [vmem:[#allocation8 + $0x6b0] sm:$0xff]
    %v638 = vld [vmem:[#allocation8 + $0x6b8] sm:$0xff]
    %v639 = vld [vmem:[#allocation8 + $0x6c0] sm:$0xff]
    %v640 = vld [vmem:[#allocation8 + $0x6c8] sm:$0xff]
    %v641 = vld [vmem:[#allocation8 + $0x6d0] sm:$0xff]
    %v642 = vld [vmem:[#allocation8 + $0x6d8] sm:$0xff]
    %v643 = vld [vmem:[#allocation8 + $0x6e0] sm:$0xff]
    %v644 = vld [vmem:[#allocation8 + $0x6e8] sm:$0xff]
    %v645 = vld [vmem:[#allocation8 + $0x6f0] sm:$0xff]
    %v646 = vld [vmem:[#allocation8 + $0x6f8] sm:$0xff]
    %v647 = vld [vmem:[#allocation8 + $0x700] sm:$0xff]
    %v648 = vld [vmem:[#allocation8 + $0x708] sm:$0xff]
    %v649 = vld [vmem:[#allocation8 + $0x710] sm:$0xff]
    %v650 = vld [vmem:[#allocation8 + $0x718] sm:$0xff]
    %v651 = vld [vmem:[#allocation8 + $0x720] sm:$0xff]
    %v652 = vld [vmem:[#allocation8 + $0x728] sm:$0xff]
    %v653 = vld [vmem:[#allocation8 + $0x730] sm:$0xff]
    %v654 = vld [vmem:[#allocation8 + $0x738] sm:$0xff]
    %v655 = vld [vmem:[#allocation8 + $0x740] sm:$0xff]
    %v656 = vld [vmem:[#allocation8 + $0x748] sm:$0xff]
    %v657 = vld [vmem:[#allocation8 + $0x750] sm:$0xff]
    %v658 = vld [vmem:[#allocation8 + $0x758] sm:$0xff]
    %v659 = vld [vmem:[#allocation8 + $0x760] sm:$0xff]
    %v660 = vld [vmem:[#allocation8 + $0x768] sm:$0xff]
    %v661 = vld [vmem:[#allocation8 + $0x770] sm:$0xff]
    %v662 = vld [vmem:[#allocation8 + $0x778] sm:$0xff]
    %v663 = vld [vmem:[#allocation8 + $0x780] sm:$0xff]
    %v664 = vld [vmem:[#allocation8 + $0x788] sm:$0xff]
    %v665 = vld [vmem:[#allocation8 + $0x790] sm:$0xff]
    %v666 = vld [vmem:[#allocation8 + $0x798] sm:$0xff]
    %v667 = vld [vmem:[#allocation8 + $0x7a0] sm:$0xff]
    %v668 = vld [vmem:[#allocation8 + $0x7a8] sm:$0xff]
    %v669 = vld [vmem:[#allocation8 + $0x7b0] sm:$0xff]
    %v670 = vld [vmem:[#allocation8 + $0x7b8] sm:$0xff]
    %v671 = vld [vmem:[#allocation8 + $0x7c0] sm:$0xff]
    %v672 = vld [vmem:[#allocation8 + $0x7c8] sm:$0xff]
    %v673 = vld [vmem:[#allocation8 + $0x7d0] sm:$0xff]
    %v674 = vld [vmem:[#allocation8 + $0x7d8] sm:$0xff]
    %v675 = vld [vmem:[#allocation8 + $0x7e0] sm:$0xff]
    %v676 = vld [vmem:[#allocation8 + $0x7e8] sm:$0xff]
    %v677 = vld [vmem:[#allocation8 + $0x7f0] sm:$0xff]
    %v678 = vld [vmem:[#allocation8 + $0x7f8] sm:$0xff]
    %v679 = vld [vmem:[#allocation10] sm:$0xf]
    %v681 = vperm.slane %v679, 0
    %v682 = vperm.slane %v679, 1
    %v683 = vperm.slane %v679, 2
    %v684 = vperm.slane %v679, 3
    %689 = vmatpush.msra.mxu0 %v483
    %690 = vmatpush.msra.mxu0 %v479
    %691 = vmatpush.msra.mxu0 %v475
    %692 = vmatpush.msra.mxu0 %v471
    %693 = vmatpush.msra.mxu0 %v467
    %694 = vmatpush.msra.mxu0 %v463
    %695 = vmatpush.msra.mxu0 %v459
    %696 = vmatpush.msra.mxu0 %v455
    %697 = vmatpush.msra.mxu0 %v451
    %698 = vmatpush.msra.mxu0 %v447
    %699 = vmatpush.msra.mxu0 %v443
    %700 = vmatpush.msra.mxu0 %v439
    %701 = vmatpush.msra.mxu0 %v435
    %702 = vmatpush.msra.mxu0 %v431
    %703 = vmatpush.msra.mxu0 %v427
    %704 = vmatpush.msra.mxu0 %v423
    %705 = vmatmul.f32.gmra.mxu0 %v419
    %v706 = vpop.f32.mrf.mxu0
    %v707 = vadd.f32 %v681, %v706
    %708 = vdwg.mxu0
    %709 = vmatpush.msra.mxu0 %v547
    %710 = vmatpush.msra.mxu0 %v543
    %711 = vmatpush.msra.mxu0 %v539
    %712 = vmatpush.msra.mxu0 %v535
    %713 = vmatpush.msra.mxu0 %v531
    %714 = vmatpush.msra.mxu0 %v527
    %715 = vmatpush.msra.mxu0 %v523
    %716 = vmatpush.msra.mxu0 %v519
    %717 = vmatpush.msra.mxu0 %v515
    %718 = vmatpush.msra.mxu0 %v511
    %719 = vmatpush.msra.mxu0 %v507
    %720 = vmatpush.msra.mxu0 %v503
    %721 = vmatpush.msra.mxu0 %v499
    %722 = vmatpush.msra.mxu0 %v495
    %723 = vmatpush.msra.mxu0 %v491
    %724 = vmatpush.msra.mxu0 %v487
    %725 = vmatmul.f32.gmra.mxu0 %v420
    %v726 = vpop.f32.mrf.mxu0
    %v727 = vadd.f32 %v707, %v726
    %728 = vdwg.mxu0
    %729 = vmatpush.msra.mxu0 %v611
    %730 = vmatpush.msra.mxu0 %v607
    %731 = vmatpush.msra.mxu0 %v603
    %732 = vmatpush.msra.mxu0 %v599
    %733 = vmatpush.msra.mxu0 %v595
    %734 = vmatpush.msra.mxu0 %v591
    %735 = vmatpush.msra.mxu0 %v587
    %736 = vmatpush.msra.mxu0 %v583
    %737 = vmatpush.msra.mxu0 %v579
    %738 = vmatpush.msra.mxu0 %v575
    %739 = vmatpush.msra.mxu0 %v571
    %740 = vmatpush.msra.mxu0 %v567
    %741 = vmatpush.msra.mxu0 %v563
    %742 = vmatpush.msra.mxu0 %v559
    %743 = vmatpush.msra.mxu0 %v555
    %744 = vmatpush.msra.mxu0 %v551
    %745 = vmatmul.f32.gmra.mxu0 %v421
    %v746 = vpop.f32.mrf.mxu0
    %v747 = vadd.f32 %v727, %v746
    %748 = vdwg.mxu0
    %749 = vmatpush.msra.mxu0 %v675
    %750 = vmatpush.msra.mxu0 %v671
    %751 = vmatpush.msra.mxu0 %v667
    %752 = vmatpush.msra.mxu0 %v663
    %753 = vmatpush.msra.mxu0 %v659
    %754 = vmatpush.msra.mxu0 %v655
    %755 = vmatpush.msra.mxu0 %v651
    %756 = vmatpush.msra.mxu0 %v647
    %757 = vmatpush.msra.mxu0 %v643
    %758 = vmatpush.msra.mxu0 %v639
    %759 = vmatpush.msra.mxu0 %v635
    %760 = vmatpush.msra.mxu0 %v631
    %761 = vmatpush.msra.mxu0 %v627
    %762 = vmatpush.msra.mxu0 %v623
    %763 = vmatpush.msra.mxu0 %v619
    %764 = vmatpush.msra.mxu0 %v615
    %765 = vmatmul.f32.gmra.mxu0 %v422
    %v766 = vpop.f32.mrf.mxu0
    %v767 = vadd.f32 %v747, %v766
    %768 = vdwg.mxu0
    %769 = vmatpush.msra.mxu0 %v484
    %770 = vmatpush.msra.mxu0 %v480
    %771 = vmatpush.msra.mxu0 %v476
    %772 = vmatpush.msra.mxu0 %v472
    %773 = vmatpush.msra.mxu0 %v468
    %774 = vmatpush.msra.mxu0 %v464
    %775 = vmatpush.msra.mxu0 %v460
    %776 = vmatpush.msra.mxu0 %v456
    %777 = vmatpush.msra.mxu0 %v452
    %778 = vmatpush.msra.mxu0 %v448
    %779 = vmatpush.msra.mxu0 %v444
    %780 = vmatpush.msra.mxu0 %v440
    %781 = vmatpush.msra.mxu0 %v436
    %782 = vmatpush.msra.mxu0 %v432
    %783 = vmatpush.msra.mxu0 %v428
    %784 = vmatpush.msra.mxu0 %v424
    %785 = vmatmul.f32.gmra.mxu0 %v419
    %v786 = vpop.f32.mrf.mxu0
    %v787 = vadd.f32 %v682, %v786
    %788 = vdwg.mxu0
    %789 = vmatpush.msra.mxu0 %v548
    %790 = vmatpush.msra.mxu0 %v544
    %791 = vmatpush.msra.mxu0 %v540
    %792 = vmatpush.msra.mxu0 %v536
    %793 = vmatpush.msra.mxu0 %v532
    %794 = vmatpush.msra.mxu0 %v528
    %795 = vmatpush.msra.mxu0 %v524
    %796 = vmatpush.msra.mxu0 %v520
    %797 = vmatpush.msra.mxu0 %v516
    %798 = vmatpush.msra.mxu0 %v512
    %799 = vmatpush.msra.mxu0 %v508
    %800 = vmatpush.msra.mxu0 %v504
    %801 = vmatpush.msra.mxu0 %v500
    %802 = vmatpush.msra.mxu0 %v496
    %803 = vmatpush.msra.mxu0 %v492
    %804 = vmatpush.msra.mxu0 %v488
    %805 = vmatmul.f32.gmra.mxu0 %v420
    %v806 = vpop.f32.mrf.mxu0
    %v807 = vadd.f32 %v787, %v806
    %808 = vdwg.mxu0
    %809 = vmatpush.msra.mxu0 %v612
    %810 = vmatpush.msra.mxu0 %v608
    %811 = vmatpush.msra.mxu0 %v604
    %812 = vmatpush.msra.mxu0 %v600
    %813 = vmatpush.msra.mxu0 %v596
    %814 = vmatpush.msra.mxu0 %v592
    %815 = vmatpush.msra.mxu0 %v588
    %816 = vmatpush.msra.mxu0 %v584
    %817 = vmatpush.msra.mxu0 %v580
    %818 = vmatpush.msra.mxu0 %v576
    %819 = vmatpush.msra.mxu0 %v572
    %820 = vmatpush.msra.mxu0 %v568
    %821 = vmatpush.msra.mxu0 %v564
    %822 = vmatpush.msra.mxu0 %v560
    %823 = vmatpush.msra.mxu0 %v556
    %824 = vmatpush.msra.mxu0 %v552
    %825 = vmatmul.f32.gmra.mxu0 %v421
    %v826 = vpop.f32.mrf.mxu0
    %v827 = vadd.f32 %v807, %v826
    %828 = vdwg.mxu0
    %829 = vmatpush.msra.mxu0 %v676
    %830 = vmatpush.msra.mxu0 %v672
    %831 = vmatpush.msra.mxu0 %v668
    %832 = vmatpush.msra.mxu0 %v664
    %833 = vmatpush.msra.mxu0 %v660
    %834 = vmatpush.msra.mxu0 %v656
    %835 = vmatpush.msra.mxu0 %v652
    %836 = vmatpush.msra.mxu0 %v648
    %837 = vmatpush.msra.mxu0 %v644
    %838 = vmatpush.msra.mxu0 %v640
    %839 = vmatpush.msra.mxu0 %v636
    %840 = vmatpush.msra.mxu0 %v632
    %841 = vmatpush.msra.mxu0 %v628
    %842 = vmatpush.msra.mxu0 %v624
    %843 = vmatpush.msra.mxu0 %v620
    %844 = vmatpush.msra.mxu0 %v616
    %845 = vmatmul.f32.gmra.mxu0 %v422
    %v846 = vpop.f32.mrf.mxu0
    %v847 = vadd.f32 %v827, %v846
    %848 = vdwg.mxu0
    %849 = vmatpush.msra.mxu0 %v485
    %850 = vmatpush.msra.mxu0 %v481
    %851 = vmatpush.msra.mxu0 %v477
    %852 = vmatpush.msra.mxu0 %v473
    %853 = vmatpush.msra.mxu0 %v469
    %854 = vmatpush.msra.mxu0 %v465
    %855 = vmatpush.msra.mxu0 %v461
    %856 = vmatpush.msra.mxu0 %v457
    %857 = vmatpush.msra.mxu0 %v453
    %858 = vmatpush.msra.mxu0 %v449
    %859 = vmatpush.msra.mxu0 %v445
    %860 = vmatpush.msra.mxu0 %v441
    %861 = vmatpush.msra.mxu0 %v437
    %862 = vmatpush.msra.mxu0 %v433
    %863 = vmatpush.msra.mxu0 %v429
    %864 = vmatpush.msra.mxu0 %v425
    %865 = vmatmul.f32.gmra.mxu0 %v419
    %v866 = vpop.f32.mrf.mxu0
    %v867 = vadd.f32 %v683, %v866
    %868 = vdwg.mxu0
    %869 = vmatpush.msra.mxu0 %v549
    %870 = vmatpush.msra.mxu0 %v545
    %871 = vmatpush.msra.mxu0 %v541
    %872 = vmatpush.msra.mxu0 %v537
    %873 = vmatpush.msra.mxu0 %v533
    %874 = vmatpush.msra.mxu0 %v529
    %875 = vmatpush.msra.mxu0 %v525
    %876 = vmatpush.msra.mxu0 %v521
    %877 = vmatpush.msra.mxu0 %v517
    %878 = vmatpush.msra.mxu0 %v513
    %879 = vmatpush.msra.mxu0 %v509
    %880 = vmatpush.msra.mxu0 %v505
    %881 = vmatpush.msra.mxu0 %v501
    %882 = vmatpush.msra.mxu0 %v497
    %883 = vmatpush.msra.mxu0 %v493
    %884 = vmatpush.msra.mxu0 %v489
    %885 = vmatmul.f32.gmra.mxu0 %v420
    %v886 = vpop.f32.mrf.mxu0
    %v887 = vadd.f32 %v867, %v886
    %888 = vdwg.mxu0
    %889 = vmatpush.msra.mxu0 %v613
    %890 = vmatpush.msra.mxu0 %v609
    %891 = vmatpush.msra.mxu0 %v605
    %892 = vmatpush.msra.mxu0 %v601
    %893 = vmatpush.msra.mxu0 %v597
    %894 = vmatpush.msra.mxu0 %v593
    %895 = vmatpush.msra.mxu0 %v589
    %896 = vmatpush.msra.mxu0 %v585
    %897 = vmatpush.msra.mxu0 %v581
    %898 = vmatpush.msra.mxu0 %v577
    %899 = vmatpush.msra.mxu0 %v573
    %900 = vmatpush.msra.mxu0 %v569
    %901 = vmatpush.msra.mxu0 %v565
    %902 = vmatpush.msra.mxu0 %v561
    %903 = vmatpush.msra.mxu0 %v557
    %904 = vmatpush.msra.mxu0 %v553
    %905 = vmatmul.f32.gmra.mxu0 %v421
    %v906 = vpop.f32.mrf.mxu0
    %v907 = vadd.f32 %v887, %v906
    %908 = vdwg.mxu0
    %909 = vmatpush.msra.mxu0 %v677
    %910 = vmatpush.msra.mxu0 %v673
    %911 = vmatpush.msra.mxu0 %v669
    %912 = vmatpush.msra.mxu0 %v665
    %913 = vmatpush.msra.mxu0 %v661
    %914 = vmatpush.msra.mxu0 %v657
    %915 = vmatpush.msra.mxu0 %v653
    %916 = vmatpush.msra.mxu0 %v649
    %917 = vmatpush.msra.mxu0 %v645
    %918 = vmatpush.msra.mxu0 %v641
    %919 = vmatpush.msra.mxu0 %v637
    %920 = vmatpush.msra.mxu0 %v633
    %921 = vmatpush.msra.mxu0 %v629
    %922 = vmatpush.msra.mxu0 %v625
    %923 = vmatpush.msra.mxu0 %v621
    %924 = vmatpush.msra.mxu0 %v617
    %925 = vmatmul.f32.gmra.mxu0 %v422
    %v926 = vpop.f32.mrf.mxu0
    %v927 = vadd.f32 %v907, %v926
    %928 = vdwg.mxu0
    %929 = vmatpush.msra.mxu0 %v486
    %930 = vmatpush.msra.mxu0 %v482
    %931 = vmatpush.msra.mxu0 %v478
    %932 = vmatpush.msra.mxu0 %v474
    %933 = vmatpush.msra.mxu0 %v470
    %934 = vmatpush.msra.mxu0 %v466
    %935 = vmatpush.msra.mxu0 %v462
    %936 = vmatpush.msra.mxu0 %v458
    %937 = vmatpush.msra.mxu0 %v454
    %938 = vmatpush.msra.mxu0 %v450
    %939 = vmatpush.msra.mxu0 %v446
    %940 = vmatpush.msra.mxu0 %v442
    %941 = vmatpush.msra.mxu0 %v438
    %942 = vmatpush.msra.mxu0 %v434
    %943 = vmatpush.msra.mxu0 %v430
    %944 = vmatpush.msra.mxu0 %v426
    %945 = vmatmul.f32.gmra.mxu0 %v419
    %v946 = vpop.f32.mrf.mxu0
    %v947 = vadd.f32 %v684, %v946
    %948 = vdwg.mxu0
    %949 = vmatpush.msra.mxu0 %v550
    %950 = vmatpush.msra.mxu0 %v546
    %951 = vmatpush.msra.mxu0 %v542
    %952 = vmatpush.msra.mxu0 %v538
    %953 = vmatpush.msra.mxu0 %v534
    %954 = vmatpush.msra.mxu0 %v530
    %955 = vmatpush.msra.mxu0 %v526
    %956 = vmatpush.msra.mxu0 %v522
    %957 = vmatpush.msra.mxu0 %v518
    %958 = vmatpush.msra.mxu0 %v514
    %959 = vmatpush.msra.mxu0 %v510
    %960 = vmatpush.msra.mxu0 %v506
    %961 = vmatpush.msra.mxu0 %v502
    %962 = vmatpush.msra.mxu0 %v498
    %963 = vmatpush.msra.mxu0 %v494
    %964 = vmatpush.msra.mxu0 %v490
    %965 = vmatmul.f32.gmra.mxu0 %v420
    %v966 = vpop.f32.mrf.mxu0
    %v967 = vadd.f32 %v947, %v966
    %968 = vdwg.mxu0
    %969 = vmatpush.msra.mxu0 %v614
    %970 = vmatpush.msra.mxu0 %v610
    %971 = vmatpush.msra.mxu0 %v606
    %972 = vmatpush.msra.mxu0 %v602
    %973 = vmatpush.msra.mxu0 %v598
    %974 = vmatpush.msra.mxu0 %v594
    %975 = vmatpush.msra.mxu0 %v590
    %976 = vmatpush.msra.mxu0 %v586
    %977 = vmatpush.msra.mxu0 %v582
    %978 = vmatpush.msra.mxu0 %v578
    %979 = vmatpush.msra.mxu0 %v574
    %980 = vmatpush.msra.mxu0 %v570
    %981 = vmatpush.msra.mxu0 %v566
    %982 = vmatpush.msra.mxu0 %v562
    %983 = vmatpush.msra.mxu0 %v558
    %984 = vmatpush.msra.mxu0 %v554
    %985 = vmatmul.f32.gmra.mxu0 %v421
    %v986 = vpop.f32.mrf.mxu0
    %v987 = vadd.f32 %v967, %v986
    %988 = vdwg.mxu0
    %989 = vmatpush.msra.mxu0 %v678
    %990 = vmatpush.msra.mxu0 %v674
    %991 = vmatpush.msra.mxu0 %v670
    %992 = vmatpush.msra.mxu0 %v666
    %993 = vmatpush.msra.mxu0 %v662
    %994 = vmatpush.msra.mxu0 %v658
    %995 = vmatpush.msra.mxu0 %v654
    %996 = vmatpush.msra.mxu0 %v650
    %997 = vmatpush.msra.mxu0 %v646
    %998 = vmatpush.msra.mxu0 %v642
    %999 = vmatpush.msra.mxu0 %v638
    %1000 = vmatpush.msra.mxu0 %v634
    %1001 = vmatpush.msra.mxu0 %v630
    %1002 = vmatpush.msra.mxu0 %v626
    %1003 = vmatpush.msra.mxu0 %v622
    %1004 = vmatpush.msra.mxu0 %v618
    %1005 = vmatmul.f32.gmra.mxu0 %v422
    %v1006 = vpop.f32.mrf.mxu0
    %v1007 = vadd.f32 %v987, %v1006
    %1008 = vdwg.mxu0
    %v1009 = vmax.f32 %v767, 0.0
    %v1010 = vmax.f32 %v847, 0.0
    %v1011 = vmax.f32 %v927, 0.0
    %v1012 = vmax.f32 %v1007, 0.0
    %v1013 = vld [vmem:[#allocation11] sm:$0xff]
    %v1014 = vld [vmem:[#allocation11 + $0x8] sm:$0xff]
    %v1015 = vld [vmem:[#allocation11 + $0x10] sm:$0xff]
    %v1016 = vld [vmem:[#allocation11 + $0x18] sm:$0xff]
    %v1017 = vld [vmem:[#allocation11 + $0x20] sm:$0xff]
    %v1018 = vld [vmem:[#allocation11 + $0x28] sm:$0xff]
    %v1019 = vld [vmem:[#allocation11 + $0x30] sm:$0xff]
    %v1020 = vld [vmem:[#allocation11 + $0x38] sm:$0xff]
    %v1021 = vld [vmem:[#allocation11 + $0x40] sm:$0xff]
    %v1022 = vld [vmem:[#allocation11 + $0x48] sm:$0xff]
    %v1023 = vld [vmem:[#allocation11 + $0x50] sm:$0xff]
    %v1024 = vld [vmem:[#allocation11 + $0x58] sm:$0xff]
    %v1025 = vld [vmem:[#allocation11 + $0x60] sm:$0xff]
    %v1026 = vld [vmem:[#allocation11 + $0x68] sm:$0xff]
    %v1027 = vld [vmem:[#allocation11 + $0x70] sm:$0xff]
    %v1028 = vld [vmem:[#allocation11 + $0x78] sm:$0xff]
    %v1029 = vld [vmem:[#allocation11 + $0x80] sm:$0xff]
    %v1030 = vld [vmem:[#allocation11 + $0x88] sm:$0xff]
    %v1031 = vld [vmem:[#allocation11 + $0x90] sm:$0xff]
    %v1032 = vld [vmem:[#allocation11 + $0x98] sm:$0xff]
    %v1033 = vld [vmem:[#allocation11 + $0xa0] sm:$0xff]
    %v1034 = vld [vmem:[#allocation11 + $0xa8] sm:$0xff]
    %v1035 = vld [vmem:[#allocation11 + $0xb0] sm:$0xff]
    %v1036 = vld [vmem:[#allocation11 + $0xb8] sm:$0xff]
    %v1037 = vld [vmem:[#allocation11 + $0xc0] sm:$0xff]
    %v1038 = vld [vmem:[#allocation11 + $0xc8] sm:$0xff]
    %v1039 = vld [vmem:[#allocation11 + $0xd0] sm:$0xff]
    %v1040 = vld [vmem:[#allocation11 + $0xd8] sm:$0xff]
    %v1041 = vld [vmem:[#allocation11 + $0xe0] sm:$0xff]
    %v1042 = vld [vmem:[#allocation11 + $0xe8] sm:$0xff]
    %v1043 = vld [vmem:[#allocation11 + $0xf0] sm:$0xff]
    %v1044 = vld [vmem:[#allocation11 + $0xf8] sm:$0xff]
    %v1045 = vld [vmem:[#allocation11 + $0x100] sm:$0xff]
    %v1046 = vld [vmem:[#allocation11 + $0x108] sm:$0xff]
    %v1047 = vld [vmem:[#allocation11 + $0x110] sm:$0xff]
    %v1048 = vld [vmem:[#allocation11 + $0x118] sm:$0xff]
    %v1049 = vld [vmem:[#allocation11 + $0x120] sm:$0xff]
    %v1050 = vld [vmem:[#allocation11 + $0x128] sm:$0xff]
    %v1051 = vld [vmem:[#allocation11 + $0x130] sm:$0xff]
    %v1052 = vld [vmem:[#allocation11 + $0x138] sm:$0xff]
    %v1053 = vld [vmem:[#allocation11 + $0x140] sm:$0xff]
    %v1054 = vld [vmem:[#allocation11 + $0x148] sm:$0xff]
    %v1055 = vld [vmem:[#allocation11 + $0x150] sm:$0xff]
    %v1056 = vld [vmem:[#allocation11 + $0x158] sm:$0xff]
    %v1057 = vld [vmem:[#allocation11 + $0x160] sm:$0xff]
    %v1058 = vld [vmem:[#allocation11 + $0x168] sm:$0xff]
    %v1059 = vld [vmem:[#allocation11 + $0x170] sm:$0xff]
    %v1060 = vld [vmem:[#allocation11 + $0x178] sm:$0xff]
    %v1061 = vld [vmem:[#allocation11 + $0x180] sm:$0xff]
    %v1062 = vld [vmem:[#allocation11 + $0x188] sm:$0xff]
    %v1063 = vld [vmem:[#allocation11 + $0x190] sm:$0xff]
    %v1064 = vld [vmem:[#allocation11 + $0x198] sm:$0xff]
    %v1065 = vld [vmem:[#allocation11 + $0x1a0] sm:$0xff]
    %v1066 = vld [vmem:[#allocation11 + $0x1a8] sm:$0xff]
    %v1067 = vld [vmem:[#allocation11 + $0x1b0] sm:$0xff]
    %v1068 = vld [vmem:[#allocation11 + $0x1b8] sm:$0xff]
    %v1069 = vld [vmem:[#allocation11 + $0x1c0] sm:$0xff]
    %v1070 = vld [vmem:[#allocation11 + $0x1c8] sm:$0xff]
    %v1071 = vld [vmem:[#allocation11 + $0x1d0] sm:$0xff]
    %v1072 = vld [vmem:[#allocation11 + $0x1d8] sm:$0xff]
    %v1073 = vld [vmem:[#allocation11 + $0x1e0] sm:$0xff]
    %v1074 = vld [vmem:[#allocation11 + $0x1e8] sm:$0xff]
    %v1075 = vld [vmem:[#allocation11 + $0x1f0] sm:$0xff]
    %v1076 = vld [vmem:[#allocation11 + $0x1f8] sm:$0xff]
    %v1077 = vld [vmem:[%s6] sm:$0x1]
    %1078 = vmatpush.msra.mxu0 %v1028
    %1079 = vmatpush.msra.mxu0 %v1027
    %1080 = vmatpush.msra.mxu0 %v1026
    %1081 = vmatpush.msra.mxu0 %v1025
    %1082 = vmatpush.msra.mxu0 %v1024
    %1083 = vmatpush.msra.mxu0 %v1023
    %1084 = vmatpush.msra.mxu0 %v1022
    %1085 = vmatpush.msra.mxu0 %v1021
    %1086 = vmatpush.msra.mxu0 %v1020
    %1087 = vmatpush.msra.mxu0 %v1019
    %1088 = vmatpush.msra.mxu0 %v1018
    %1089 = vmatpush.msra.mxu0 %v1017
    %1090 = vmatpush.msra.mxu0 %v1016
    %1091 = vmatpush.msra.mxu0 %v1015
    %1092 = vmatpush.msra.mxu0 %v1014
    %1093 = vmatpush.msra.mxu0 %v1013
    %1094 = vmatmul.f32.gmra.mxu0 %v1009
    %v1095 = vpop.f32.mrf.mxu0
    %v1096 = vadd.f32 %v1077, %v1095
    %1097 = vdwg.mxu0
    %1098 = vmatpush.msra.mxu0 %v1044
    %1099 = vmatpush.msra.mxu0 %v1043
    %1100 = vmatpush.msra.mxu0 %v1042
    %1101 = vmatpush.msra.mxu0 %v1041
    %1102 = vmatpush.msra.mxu0 %v1040
    %1103 = vmatpush.msra.mxu0 %v1039
    %1104 = vmatpush.msra.mxu0 %v1038
    %1105 = vmatpush.msra.mxu0 %v1037
    %1106 = vmatpush.msra.mxu0 %v1036
    %1107 = vmatpush.msra.mxu0 %v1035
    %1108 = vmatpush.msra.mxu0 %v1034
    %1109 = vmatpush.msra.mxu0 %v1033
    %1110 = vmatpush.msra.mxu0 %v1032
    %1111 = vmatpush.msra.mxu0 %v1031
    %1112 = vmatpush.msra.mxu0 %v1030
    %1113 = vmatpush.msra.mxu0 %v1029
    %1114 = vmatmul.f32.gmra.mxu0 %v1010
    %v1115 = vpop.f32.mrf.mxu0
    %v1116 = vadd.f32 %v1096, %v1115
    %1117 = vdwg.mxu0
    %1118 = vmatpush.msra.mxu0 %v1060
    %1119 = vmatpush.msra.mxu0 %v1059
    %1120 = vmatpush.msra.mxu0 %v1058
    %1121 = vmatpush.msra.mxu0 %v1057
    %1122 = vmatpush.msra.mxu0 %v1056
    %1123 = vmatpush.msra.mxu0 %v1055
    %1124 = vmatpush.msra.mxu0 %v1054
    %1125 = vmatpush.msra.mxu0 %v1053
    %1126 = vmatpush.msra.mxu0 %v1052
    %1127 = vmatpush.msra.mxu0 %v1051
    %1128 = vmatpush.msra.mxu0 %v1050
    %1129 = vmatpush.msra.mxu0 %v1049
    %1130 = vmatpush.msra.mxu0 %v1048
    %1131 = vmatpush.msra.mxu0 %v1047
    %1132 = vmatpush.msra.mxu0 %v1046
    %1133 = vmatpush.msra.mxu0 %v1045
    %1134 = vmatmul.f32.gmra.mxu0 %v1011
    %v1135 = vpop.f32.mrf.mxu0
    %v1136 = vadd.f32 %v1116, %v1135
    %1137 = vdwg.mxu0
    %1138 = vmatpush.msra.mxu0 %v1076
    %1139 = vmatpush.msra.mxu0 %v1075
    %1140 = vmatpush.msra.mxu0 %v1074
    %1141 = vmatpush.msra.mxu0 %v1073
    %1142 = vmatpush.msra.mxu0 %v1072
    %1143 = vmatpush.msra.mxu0 %v1071
    %1144 = vmatpush.msra.mxu0 %v1070
    %1145 = vmatpush.msra.mxu0 %v1069
    %1146 = vmatpush.msra.mxu0 %v1068
    %1147 = vmatpush.msra.mxu0 %v1067
    %1148 = vmatpush.msra.mxu0 %v1066
    %1149 = vmatpush.msra.mxu0 %v1065
    %1150 = vmatpush.msra.mxu0 %v1064
    %1151 = vmatpush.msra.mxu0 %v1063
    %1152 = vmatpush.msra.mxu0 %v1062
    %1153 = vmatpush.msra.mxu0 %v1061
    %1154 = vmatmul.f32.gmra.mxu0 %v1012
    %v1155 = vpop.f32.mrf.mxu0
    %v1156 = vadd.f32 %v1136, %v1155
    %1157 = vdwg.mxu0
    %1158 = vst [vmem:[#allocation13] sm:$0x1] %v1156
    // Predicated region
    $region54: #{tpu_custom_call.1} parent=1 // pred_check
      _
    $region55: #{tpu_custom_call.1} parent=1 // pred_check_branch
      %1160 = sbr.rel (0) target = $region57
    $region56: #{tpu_custom_call.1} parent=1 // pred_region
      %1162 = vsyncadd [#allocation4], 0
      %s1164 = sshll.u32 [#allocation13], 4
      %s1165 = int_to_ptr.vmem [resolvable:$true] %s1164
      %s1166 = sshll.u32 %s7, 4
      %s1167 = int_to_ptr.hbm [resolvable:$true] %s1166
      %1169 = dma.vmem_to_hbm [thread:$0]  %s1165, 16, %s1167, [#allocation4]
    $region57: #{tpu_custom_call.1} parent=1 // pred_fallthru
      _
    // Predicated region
    $region58: #{tpu_custom_call.1} parent=1 // pred_check
      _
    $region59: #{tpu_custom_call.1} parent=1 // pred_check_branch
      %1171 = sbr.rel (0) target = $region61
    $region60: #{tpu_custom_call.1} parent=1 // pred_region
      %1173 = dma.done [#allocation4], 16
    $region61: #{tpu_custom_call.1} parent=1 // pred_fallthru
      _
    %1174 = vsyncpa [#allocation3], 1
    %1175 = vsyncpa [#allocation6], 1
    %1176 = vsyncpa [#allocation9], 1
    %1177 = vsyncpa [#allocation12], 1
    %1178 = vsyncpa [#allocation4], 1

</llo_original>
